<compile_context>
chip_gen: v5e
topology: v5e:2x2
jax: 0.10.0
libtpu: 0.0.40
codegen_flags: <defaults>
</compile_context>

<pallas_src>
import functools

import jax
import jax.numpy as jnp
from jax.experimental import pallas as pl
from jax.experimental.pallas import tpu as pltpu


def _decoder_kernel(u_ref, v_ref, w_ref, c_ref, o_ref, *, packed):
    # u_ref: (TE, D)                         gathered user features (MXU dtype)
    # v_ref: (TE, D)                         gathered item features (f32)
    # w_ref: (D, W*D) if packed else (W, D, D)   basis weights (MXU dtype)
    # c_ref: (W, C)                          classifier weights (f32)
    # o_ref: (TE, C)
    u = u_ref[...]
    v = v_ref[...]                       # hoisted: loaded once per tile
    c = c_ref[...].astype(jnp.float32)   # (W, C), tiny
    num_weights, num_classes = c.shape
    te, d = v.shape

    acc = jnp.zeros((te, num_classes), dtype=jnp.float32)
    if packed:
        # One lane-filling MXU matmul: (TE, D) @ (D, W*D).  The segment slices
        # below are lane-group aligned because D % 128 == 0.
        prod = jnp.dot(u, w_ref[...], preferred_element_type=jnp.float32)
        for i in range(num_weights):                          # static unroll
            seg = prod[:, i * d:(i + 1) * d]                  # (TE, D)  f32
            s = jnp.sum(seg * v, axis=1, keepdims=True)       # (TE, 1)  f32
            acc = acc + s * c[i]                              # VPU classifier
    else:
        for i in range(num_weights):                          # static unroll
            tmp = jnp.dot(u, w_ref[i], preferred_element_type=jnp.float32)
            s = jnp.sum(tmp * v, axis=1, keepdims=True)       # (TE, 1)  f32
            acc = acc + s * c[i]                              # VPU classifier
    o_ref[...] = acc.astype(o_ref.dtype)


def _round_up(x, m):
    return (x + m - 1) // m * m


def decoder_forward(user_inputs, item_inputs, user_indices, item_indices,
                    weights, weight_classifier, *,
                    max_edge_tile=512, mxu_dtype=jnp.float32):
    """Pallas implementation of Decoder.forward (dropout/activation = identity)."""
    num_weights, input_dim, _ = weights.shape
    num_classes = weight_classifier.shape[1]

    # TODO(synk): the row gather still round-trips through HBM via XLA advanced
    # indexing; an in-kernel DMA gather (scalar-prefetched indices + per-row
    # async copies) would roughly halve HBM traffic on the streaming operands.
    u = user_inputs[user_indices].astype(mxu_dtype)      # (E, D)  MXU operand
    v = item_inputs[item_indices].astype(jnp.float32)    # (E, D)  elementwise stays f32
    num_edges = u.shape[0]

    # Large edge tile: amortizes per-grid-step overhead and fills MXU rows.
    # bf16 operands pack 16 rows per sublane tile, f32 pack 8.  Keeping
    # max_edge_tile bounded leaves >=2 grid steps for large E (megacore).
    sub = 16 if jnp.dtype(mxu_dtype) == jnp.dtype(jnp.bfloat16) else 8
    edge_tile = _round_up(min(max_edge_tile, _round_up(num_edges, sub)), sub)
    pad_e = (-num_edges) % edge_tile
    if pad_e:
        u = jnp.pad(u, ((0, pad_e), (0, 0)))
        v = jnp.pad(v, ((0, pad_e), (0, 0)))
    e_padded = num_edges + pad_e
    grid = (e_padded // edge_tile,)

    # Fuse the per-basis matmuls into one lane-filling MXU call when the
    # feature dim is lane-group aligned; otherwise keep the per-weight loop.
    packed = (input_dim % 128 == 0)
    if packed:
        w_arg = jnp.transpose(weights, (1, 0, 2)).reshape(
            input_dim, num_weights * input_dim).astype(mxu_dtype)
        w_spec = pl.BlockSpec((input_dim, num_weights * input_dim),
                              lambda e: (0, 0))
    else:
        w_arg = weights.astype(mxu_dtype)
        w_spec = pl.BlockSpec((num_weights, input_dim, input_dim),
                              lambda e: (0, 0, 0))
    c_arg = weight_classifier.astype(jnp.float32)

    # Explicit VMEM budget (conservative: everything counted double-buffered),
    # clamped so large tiles also stay inside v7x's 64 MiB part.
    mxu_bytes = jnp.dtype(mxu_dtype).itemsize
    needed = (2 * edge_tile * input_dim * mxu_bytes        # u tiles
              + 2 * edge_tile * input_dim * 4              # v tiles
              + 2 * edge_tile * num_classes * 4            # out tiles
              + 2 * int(w_arg.size) * mxu_bytes            # basis weights
              + 2 * int(c_arg.size) * 4)                   # classifier
    vmem_limit = int(min(max(2 * needed + (8 << 20), 16 << 20), 48 << 20))

    kernel = functools.partial(_decoder_kernel, packed=packed)

    out = pl.pallas_call(
        kernel,
        out_shape=jax.ShapeDtypeStruct((e_padded, num_classes), jnp.float32),
        grid_spec=pltpu.PrefetchScalarGridSpec(
            num_scalar_prefetch=0,
            grid=grid,
            in_specs=[
                pl.BlockSpec((edge_tile, input_dim), lambda e: (e, 0)),
                pl.BlockSpec((edge_tile, input_dim), lambda e: (e, 0)),
                # Constant index_maps: weights/classifier are DMA'd once and
                # stay resident across the grid.  (At large D one would add
                # pipeline_mode=pl.Buffered(1) to drop the second buffer.)
                w_spec,
                pl.BlockSpec((num_weights, num_classes), lambda e: (0, 0)),
            ],
            out_specs=pl.BlockSpec((edge_tile, num_classes), lambda e: (e, 0)),
        ),
        compiler_params=pltpu.CompilerParams(
            dimension_semantics=("parallel",),
            vmem_limit_bytes=vmem_limit),
    )(u, v, w_arg, c_arg)

    return out[:num_edges]


# ----------------------------- reference & init -----------------------------

def _orthogonal(key, n, gain=1.1):
    a = jax.random.normal(key, (n, n), dtype=jnp.float32)
    q, r = jnp.linalg.qr(a)
    q = q * jnp.sign(jnp.diag(r))[None, :]   # sign fix, as in torch orthogonal_
    return gain * q


def _xavier_uniform(key, fan_in, fan_out):
    limit = (6.0 / (fan_in + fan_out)) ** 0.5
    return jax.random.uniform(key, (fan_in, fan_out), dtype=jnp.float32,
                              minval=-limit, maxval=limit)


def _reference(user_inputs, item_inputs, user_indices, item_indices,
               weights, weight_classifier):
    hp = jax.lax.Precision.HIGHEST
    u = user_inputs[user_indices]
    v = item_inputs[item_indices]
    basis = jnp.stack(
        [jnp.sum(jnp.dot(u, weights[i], precision=hp) * v, axis=1)
         for i in range(weights.shape[0])], axis=1)
    return jnp.dot(basis, weight_classifier, precision=hp)


if __name__ == "__main__":
    key = jax.random.PRNGKey(0)

    def make_case(k, num_users, num_items, num_edges, input_dim,
                  num_weights, num_classes):
        k_u, k_i, k_ui, k_ii, k_c, k_w = jax.random.split(k, 6)
        user_inputs = jax.random.normal(k_u, (num_users, input_dim), jnp.float32)
        item_inputs = jax.random.normal(k_i, (num_items, input_dim), jnp.float32)
        user_indices = jax.random.randint(k_ui, (num_edges,), 0, num_users)
        item_indices = jax.random.randint(k_ii, (num_edges,), 0, num_items)
        wkeys = jax.random.split(k_w, num_weights)
        weights = jnp.stack([_orthogonal(wkeys[i], input_dim, gain=1.1)
                             for i in range(num_weights)], axis=0)
        weight_classifier = _xavier_uniform(k_c, num_weights, num_classes)
        return (user_inputs, item_inputs, user_indices, item_indices,
                weights, weight_classifier)

    k1, k2 = jax.random.split(key)

    # Case 1: D=32 (not lane-aligned -> per-weight loop path), f32 MXU operands.
    args1 = make_case(k1, num_users=8, num_items=10, num_edges=16,
                      input_dim=32, num_weights=4, num_classes=5)
    out1 = jax.block_until_ready(decoder_forward(*args1))
    ref1 = _reference(*args1)
    assert out1.shape == (16, 5), out1.shape
    assert jnp.allclose(out1, ref1, atol=1e-3, rtol=1e-3), \
        float(jnp.max(jnp.abs(out1 - ref1)))

    # Case 2: D=128 (packed lane-filling MXU path), bf16 MXU operands,
    # multi-step parallel edge grid (300 edges, tile 128 -> 3 steps).
    args2 = make_case(k2, num_users=12, num_items=9, num_edges=300,
                      input_dim=128, num_weights=4, num_classes=5)
    out2 = jax.block_until_ready(
        decoder_forward(*args2, max_edge_tile=128, mxu_dtype=jnp.bfloat16))
    ui, ii, uidx, iidx, w, wc = args2
    # Reference applies the same bf16 rounding to the MXU operands.
    ref2 = _reference(ui.astype(jnp.bfloat16).astype(jnp.float32), ii,
                      uidx, iidx,
                      w.astype(jnp.bfloat16).astype(jnp.float32), wc)
    assert out2.shape == (300, 5), out2.shape
    assert jnp.allclose(out2, ref2, atol=2e-2, rtol=2e-2), \
        float(jnp.max(jnp.abs(out2 - ref2)))

    print("KERNEL_OK")
</pallas_src>

<mosaic_0001>
module attributes {stable_mosaic.version = 11 : i64} {
  func.func @_decoder_kernel(%arg0: i32, %arg1: memref<16x32xf32, #tpu.memory_space<vmem>>, %arg2: memref<16x32xf32, #tpu.memory_space<vmem>>, %arg3: memref<4x32x32xf32, #tpu.memory_space<vmem>>, %arg4: memref<4x5xf32, #tpu.memory_space<vmem>>, %arg5: memref<16x5xf32, #tpu.memory_space<vmem>>) attributes {dimension_semantics = [#tpu.dimension_semantics<parallel>], iteration_bounds = array<i64: 1>, scalar_prefetch = 0 : i64, scratch_operands = 0 : i64, tpu.core_type = #tpu.core_type<tc>, window_params = [{transform_indices = @transform_0, window_bounds = array<i64: 16, 32>}, {transform_indices = @transform_1, window_bounds = array<i64: 16, 32>}, {pipeline_mode = #tpu.pipeline_mode<synchronous>, transform_indices = @transform_2, window_bounds = array<i64: 4, 32, 32>}, {pipeline_mode = #tpu.pipeline_mode<synchronous>, transform_indices = @transform_3, window_bounds = array<i64: 4, 5>}, {transform_indices = @transform_4, window_bounds = array<i64: 16, 5>}]} {
    %c0 = arith.constant 0 : index
    %c0_0 = arith.constant 0 : index
    %0 = vector.load %arg1[%c0, %c0_0] : memref<16x32xf32, #tpu.memory_space<vmem>>, vector<16x32xf32>
    %c0_1 = arith.constant 0 : index
    %c0_2 = arith.constant 0 : index
    %1 = vector.load %arg2[%c0_1, %c0_2] : memref<16x32xf32, #tpu.memory_space<vmem>>, vector<16x32xf32>
    %c0_3 = arith.constant 0 : index
    %c0_4 = arith.constant 0 : index
    %2 = vector.load %arg4[%c0_3, %c0_4] : memref<4x5xf32, #tpu.memory_space<vmem>>, vector<4x5xf32>
    %cst = arith.constant 0.000000e+00 : f32
    %3 = vector.broadcast %cst : f32 to vector<16x5xf32>
    %c0_5 = arith.constant 0 : index
    %c0_6 = arith.constant 0 : index
    %c0_7 = arith.constant 0 : index
    %4 = vector.load %arg3[%c0_5, %c0_6, %c0_7] : memref<4x32x32xf32, #tpu.memory_space<vmem>>, vector<1x32x32xf32>
    %5 = vector.shape_cast %4 : vector<1x32x32xf32> to vector<32x32xf32>
    %cst_8 = arith.constant dense<0.000000e+00> : vector<16x32xf32>
    %6 = tpu.matmul %0, %5, %cst_8 {dimension_numbers = #tpu.dot_dimension_numbers<[1], [0], [0], [1], [0, 0, 1, 1], [], []>} : vector<16x32xf32>, vector<32x32xf32>, vector<16x32xf32> -> vector<16x32xf32>
    %7 = arith.mulf %6, %1 : vector<16x32xf32>
    %cst_9 = arith.constant dense<0.000000e+00> : vector<16xf32>
    %8 = vector.multi_reduction <add>, %7, %cst_9 [1] : vector<16x32xf32> to vector<16xf32>
    %9 = vector.shape_cast %8 : vector<16xf32> to vector<16x1xf32>
    %10 = vector.extract_strided_slice %2 {offsets = [0, 0], sizes = [1, 5], strides = [1, 1]} : vector<4x5xf32> to vector<1x5xf32>
    %11 = vector.shape_cast %10 : vector<1x5xf32> to vector<5xf32>
    %12 = vector.shape_cast %11 : vector<5xf32> to vector<1x5xf32>
    %13 = vector.broadcast %9 : vector<16x1xf32> to vector<16x5xf32>
    %14 = vector.broadcast %12 : vector<1x5xf32> to vector<16x5xf32>
    %15 = arith.mulf %13, %14 : vector<16x5xf32>
    %16 = arith.addf %3, %15 : vector<16x5xf32>
    %c1 = arith.constant 1 : index
    %c0_10 = arith.constant 0 : index
    %c0_11 = arith.constant 0 : index
    %17 = vector.load %arg3[%c1, %c0_10, %c0_11] : memref<4x32x32xf32, #tpu.memory_space<vmem>>, vector<1x32x32xf32>
    %18 = vector.shape_cast %17 : vector<1x32x32xf32> to vector<32x32xf32>
    %cst_12 = arith.constant dense<0.000000e+00> : vector<16x32xf32>
    %19 = tpu.matmul %0, %18, %cst_12 {dimension_numbers = #tpu.dot_dimension_numbers<[1], [0], [0], [1], [0, 0, 1, 1], [], []>} : vector<16x32xf32>, vector<32x32xf32>, vector<16x32xf32> -> vector<16x32xf32>
    %20 = arith.mulf %19, %1 : vector<16x32xf32>
    %cst_13 = arith.constant dense<0.000000e+00> : vector<16xf32>
    %21 = vector.multi_reduction <add>, %20, %cst_13 [1] : vector<16x32xf32> to vector<16xf32>
    %22 = vector.shape_cast %21 : vector<16xf32> to vector<16x1xf32>
    %23 = vector.extract_strided_slice %2 {offsets = [1, 0], sizes = [1, 5], strides = [1, 1]} : vector<4x5xf32> to vector<1x5xf32>
    %24 = vector.shape_cast %23 : vector<1x5xf32> to vector<5xf32>
    %25 = vector.shape_cast %24 : vector<5xf32> to vector<1x5xf32>
    %26 = vector.broadcast %22 : vector<16x1xf32> to vector<16x5xf32>
    %27 = vector.broadcast %25 : vector<1x5xf32> to vector<16x5xf32>
    %28 = arith.mulf %26, %27 : vector<16x5xf32>
    %29 = arith.addf %16, %28 : vector<16x5xf32>
    %c2 = arith.constant 2 : index
    %c0_14 = arith.constant 0 : index
    %c0_15 = arith.constant 0 : index
    %30 = vector.load %arg3[%c2, %c0_14, %c0_15] : memref<4x32x32xf32, #tpu.memory_space<vmem>>, vector<1x32x32xf32>
    %31 = vector.shape_cast %30 : vector<1x32x32xf32> to vector<32x32xf32>
    %cst_16 = arith.constant dense<0.000000e+00> : vector<16x32xf32>
    %32 = tpu.matmul %0, %31, %cst_16 {dimension_numbers = #tpu.dot_dimension_numbers<[1], [0], [0], [1], [0, 0, 1, 1], [], []>} : vector<16x32xf32>, vector<32x32xf32>, vector<16x32xf32> -> vector<16x32xf32>
    %33 = arith.mulf %32, %1 : vector<16x32xf32>
    %cst_17 = arith.constant dense<0.000000e+00> : vector<16xf32>
    %34 = vector.multi_reduction <add>, %33, %cst_17 [1] : vector<16x32xf32> to vector<16xf32>
    %35 = vector.shape_cast %34 : vector<16xf32> to vector<16x1xf32>
    %36 = vector.extract_strided_slice %2 {offsets = [2, 0], sizes = [1, 5], strides = [1, 1]} : vector<4x5xf32> to vector<1x5xf32>
    %37 = vector.shape_cast %36 : vector<1x5xf32> to vector<5xf32>
    %38 = vector.shape_cast %37 : vector<5xf32> to vector<1x5xf32>
    %39 = vector.broadcast %35 : vector<16x1xf32> to vector<16x5xf32>
    %40 = vector.broadcast %38 : vector<1x5xf32> to vector<16x5xf32>
    %41 = arith.mulf %39, %40 : vector<16x5xf32>
    %42 = arith.addf %29, %41 : vector<16x5xf32>
    %c3 = arith.constant 3 : index
    %c0_18 = arith.constant 0 : index
    %c0_19 = arith.constant 0 : index
    %43 = vector.load %arg3[%c3, %c0_18, %c0_19] : memref<4x32x32xf32, #tpu.memory_space<vmem>>, vector<1x32x32xf32>
    %44 = vector.shape_cast %43 : vector<1x32x32xf32> to vector<32x32xf32>
    %cst_20 = arith.constant dense<0.000000e+00> : vector<16x32xf32>
    %45 = tpu.matmul %0, %44, %cst_20 {dimension_numbers = #tpu.dot_dimension_numbers<[1], [0], [0], [1], [0, 0, 1, 1], [], []>} : vector<16x32xf32>, vector<32x32xf32>, vector<16x32xf32> -> vector<16x32xf32>
    %46 = arith.mulf %45, %1 : vector<16x32xf32>
    %cst_21 = arith.constant dense<0.000000e+00> : vector<16xf32>
    %47 = vector.multi_reduction <add>, %46, %cst_21 [1] : vector<16x32xf32> to vector<16xf32>
    %48 = vector.shape_cast %47 : vector<16xf32> to vector<16x1xf32>
    %49 = vector.extract_strided_slice %2 {offsets = [3, 0], sizes = [1, 5], strides = [1, 1]} : vector<4x5xf32> to vector<1x5xf32>
    %50 = vector.shape_cast %49 : vector<1x5xf32> to vector<5xf32>
    %51 = vector.shape_cast %50 : vector<5xf32> to vector<1x5xf32>
    %52 = vector.broadcast %48 : vector<16x1xf32> to vector<16x5xf32>
    %53 = vector.broadcast %51 : vector<1x5xf32> to vector<16x5xf32>
    %54 = arith.mulf %52, %53 : vector<16x5xf32>
    %55 = arith.addf %42, %54 : vector<16x5xf32>
    %c0_22 = arith.constant 0 : index
    %c0_23 = arith.constant 0 : index
    %56 = vector.load %arg5[%c0_22, %c0_23] : memref<16x5xf32, #tpu.memory_space<vmem>>, vector<16x5xf32>
    tpu.vector_store %arg5[%c0_22, %c0_23], %55 {strides = array<i32>} : memref<16x5xf32, #tpu.memory_space<vmem>>, vector<16x5xf32>,
    return
  }
  func.func @transform_0(%arg0: i32) -> (i32, i32) {
    %c0_i32 = arith.constant 0 : i32
    %c0_i32_0 = arith.constant 0 : i32
    return %arg0, %c0_i32 : i32, i32
  }
  func.func @transform_1(%arg0: i32) -> (i32, i32) {
    %c0_i32 = arith.constant 0 : i32
    %c0_i32_0 = arith.constant 0 : i32
    return %arg0, %c0_i32 : i32, i32
  }
  func.func @transform_2(%arg0: i32) -> (i32, i32, i32) {
    %c0_i32 = arith.constant 0 : i32
    %c0_i32_0 = arith.constant 0 : i32
    %c0_i32_1 = arith.constant 0 : i32
    %c0_i32_2 = arith.constant 0 : i32
    return %c0_i32, %c0_i32_0, %c0_i32_1 : i32, i32, i32
  }
  func.func @transform_3(%arg0: i32) -> (i32, i32) {
    %c0_i32 = arith.constant 0 : i32
    %c0_i32_0 = arith.constant 0 : i32
    %c0_i32_1 = arith.constant 0 : i32
    return %c0_i32, %c0_i32_0 : i32, i32
  }
  func.func @transform_4(%arg0: i32) -> (i32, i32) {
    %c0_i32 = arith.constant 0 : i32
    %c0_i32_0 = arith.constant 0 : i32
    return %arg0, %c0_i32 : i32, i32
  }
}

</mosaic_0001>

<llo_original>
// kernel: tpu_custom_call.1
$region0: #{tpu_custom_call.1}
  #allocation0 [shape = 'u32[]', space=smem, size = 0x4, offset = 0x4, fixed_abs, tag = 'smem constant byte address 0x4 - core index']
  #allocation1 [shape = 'u32[72,128]{1,0:T(1,128)}', space=vmem, size = 0x9000, scoped, tag = 'internal scratch']
  %s0 = inlined_call_operand.hbm [shape: f32[16,32], index: 0, kind: input, shape index: {}]
  %s1 = inlined_call_operand.hbm [shape: f32[16,32], index: 1, kind: input, shape index: {}]
  %s2 = inlined_call_operand.hbm [shape: f32[4,32,32], index: 2, kind: input, shape index: {}]
  %s3 = inlined_call_operand.hbm [shape: f32[4,5], index: 3, kind: input, shape index: {}]
  %s4 = inlined_call_operand.vmem [shape: f32[16,5], index: 4, kind: output, shape index: {}]
  %s5 = sld [smem:[#allocation0]]
  $region42: #{tpu_custom_call.1} parent=0
    _
  %s7 = ssub.s32 1, %s5
  %s8 = scalar_select 0, %s7, %s5
  $region1: #{tpu_custom_call.1} parent=0
    #allocation2 [shape = 'u8[8192]{0}', space=vmem, size = 0x2000, scoped, tag = 'input window, operand 0, single buffered']
    #allocation3 [shape = 's32[1]{0}', space=sflag, size = 0x4, scoped, tag = 'scoped memory for tpu_custom_call.1']
    #allocation4 [shape = 'u8[8192]{0}', space=vmem, size = 0x2000, scoped, tag = 'input window, operand 1, single buffered']
    #allocation5 [shape = 's32[1]{0}', space=sflag, size = 0x4, scoped, tag = 'scoped memory for tpu_custom_call.1']
    #allocation6 [shape = 'u8[65536]{0}', space=vmem, size = 0x10000, scoped, tag = 'input window, operand 2, single buffered']
    #allocation7 [shape = 'u8[2048]{0}', space=vmem, size = 0x800, scoped, tag = 'input window, operand 3, single buffered']
    #allocation8 [shape = 's32[1]{0}', space=sflag, size = 0x4, scoped, tag = 'scoped memory for tpu_custom_call.1']
    %9 = vsyncpa [#allocation3], 0
    %10 = vsyncpa [#allocation5], 0
    %11 = vsyncpa [#allocation8], 0
    // Predicated region
    $region2: #{tpu_custom_call.1} parent=1 // pred_check
      _
    $region3: #{tpu_custom_call.1} parent=1 // pred_check_branch
      %13 = sbr.rel (0) target = $region5
    $region4: #{tpu_custom_call.1} parent=1 // pred_region
      %15 = vsyncadd [#allocation3], 0
      %s16 = sshll.u32 %s0, 4
      %s17 = int_to_ptr.hbm [resolvable:$true] %s16
      %s18 = sshll.u32 [#allocation2], 4
      %s19 = int_to_ptr.vmem [resolvable:$true] %s18
      %24 = dma.hbm_to_vmem [thread:$0]  %s17, 256, %s19, [#allocation3], 128, 128, 8
    $region5: #{tpu_custom_call.1} parent=1 // pred_fallthru
      _
    // Predicated region
    $region6: #{tpu_custom_call.1} parent=1 // pred_check
      _
    $region7: #{tpu_custom_call.1} parent=1 // pred_check_branch
      %26 = sbr.rel (0) target = $region9
    $region8: #{tpu_custom_call.1} parent=1 // pred_region
      %28 = vsyncadd [#allocation5], 0
      %s29 = sshll.u32 %s1, 4
      %s30 = int_to_ptr.hbm [resolvable:$true] %s29
      %s31 = sshll.u32 [#allocation4], 4
      %s32 = int_to_ptr.vmem [resolvable:$true] %s31
      %37 = dma.hbm_to_vmem [thread:$0]  %s30, 256, %s32, [#allocation5], 128, 128, 8
    $region9: #{tpu_custom_call.1} parent=1 // pred_fallthru
      _
    // Predicated region
    $region10: #{tpu_custom_call.1} parent=1 // pred_check
      _
    $region11: #{tpu_custom_call.1} parent=1 // pred_check_branch
      %39 = sbr.rel (0) target = $region13
    $region12: #{tpu_custom_call.1} parent=1 // pred_region
      %41 = vsyncadd [#allocation5], 0
      %s42 = sshll.u32 %s2, 4
      %s43 = int_to_ptr.hbm [resolvable:$true] %s42
      %s44 = sshll.u32 [#allocation6], 4
      %s45 = int_to_ptr.vmem [resolvable:$true] %s44
      %50 = dma.hbm_to_vmem [thread:$0]  %s43, 2048, %s45, [#allocation5], 128, 128, 8
    $region13: #{tpu_custom_call.1} parent=1 // pred_fallthru
      _
    // Predicated region
    $region14: #{tpu_custom_call.1} parent=1 // pred_check
      _
    $region15: #{tpu_custom_call.1} parent=1 // pred_check_branch
      %52 = sbr.rel (0) target = $region17
    $region16: #{tpu_custom_call.1} parent=1 // pred_region
      %54 = vsyncadd [#allocation8], 0
      %s56 = sshll.u32 %s3, 4
      %s57 = int_to_ptr.hbm [resolvable:$true] %s56
      %s58 = sshll.u32 [#allocation7], 4
      %s59 = int_to_ptr.vmem [resolvable:$true] %s58
      %61 = dma.hbm_to_vmem [thread:$0]  %s57, 64, %s59, [#allocation8]
    $region17: #{tpu_custom_call.1} parent=1 // pred_fallthru
      _
    // Predicated region
    $region18: #{tpu_custom_call.1} parent=1 // pred_check
      _
    $region19: #{tpu_custom_call.1} parent=1 // pred_check_branch
      %63 = sbr.rel (0) target = $region21
    $region20: #{tpu_custom_call.1} parent=1 // pred_region
      %65 = dma.done [#allocation3], 256
    $region21: #{tpu_custom_call.1} parent=1 // pred_fallthru
      _
    // Predicated region
    $region22: #{tpu_custom_call.1} parent=1 // pred_check
      _
    $region23: #{tpu_custom_call.1} parent=1 // pred_check_branch
      %67 = sbr.rel (0) target = $region25
    $region24: #{tpu_custom_call.1} parent=1 // pred_region
      %69 = dma.done [#allocation5], 256
    $region25: #{tpu_custom_call.1} parent=1 // pred_fallthru
      _
    // Predicated region
    $region26: #{tpu_custom_call.1} parent=1 // pred_check
      _
    $region27: #{tpu_custom_call.1} parent=1 // pred_check_branch
      %71 = sbr.rel (0) target = $region29
    $region28: #{tpu_custom_call.1} parent=1 // pred_region
      %73 = dma.done [#allocation5], 2048
    $region29: #{tpu_custom_call.1} parent=1 // pred_fallthru
      _
    // Predicated region
    $region30: #{tpu_custom_call.1} parent=1 // pred_check
      _
    $region31: #{tpu_custom_call.1} parent=1 // pred_check_branch
      %75 = sbr.rel (0) target = $region33
    $region32: #{tpu_custom_call.1} parent=1 // pred_region
      %77 = dma.done [#allocation8], 64
    $region33: #{tpu_custom_call.1} parent=1 // pred_fallthru
      _
    %v78 = vld [vmem:[#allocation2] sm:$0xff]
    %v79 = vld [vmem:[#allocation2 + $0x8] sm:$0xff]
    %v80 = vld [vmem:[#allocation4] sm:$0xff]
    %v81 = vld [vmem:[#allocation4 + $0x8] sm:$0xff]
    %v82 = vld [vmem:[#allocation7] sm:$0xf]
    %v83 = vld [vmem:[#allocation6] sm:$0xff]
    %v84 = vld [vmem:[#allocation6 + $0x8] sm:$0xff]
    %v85 = vld [vmem:[#allocation6 + $0x10] sm:$0xff]
    %v86 = vld [vmem:[#allocation6 + $0x18] sm:$0xff]
    %vm87 = vcmask 261120
    %v89 = vsel %vm87, %v78, 0
    %v92 = vsel %vm87, %v79, 0
    %94 = vmatpush.msra.mxu0 0.0
    %95 = vmatpush.msra.mxu0 0.0
    %96 = vmatpush.msra.mxu0 0.0
    %97 = vmatpush.msra.mxu0 0.0
    %98 = vmatpush.msra.mxu0 0.0
    %99 = vmatpush.msra.mxu0 0.0
    %100 = vmatpush.msra.mxu0 0.0
    %101 = vmatpush.msra.mxu0 0.0
    %102 = vmatpush.msra.mxu0 0.0
    %103 = vmatpush.msra.mxu0 0.0
    %104 = vmatpush.msra.mxu0 0.0
    %105 = vmatpush.msra.mxu0 0.0
    %106 = vmatpush.msra.mxu0 %v86
    %107 = vmatpush.msra.mxu0 %v85
    %108 = vmatpush.msra.mxu0 %v84
    %109 = vmatpush.msra.mxu0 %v83
    %110 = vmatmul.f32.gmra.mxu0 %v89
    %v111 = vpop.f32.mrf.mxu0
    %v112 = vadd.f32 0.0, %v111
    %113 = vmatmul.f32.gmra.mxu0 %v92
    %v114 = vpop.f32.mrf.mxu0
    %v115 = vadd.f32 0.0, %v114
    %116 = vdwg.mxu0
    %v117 = vmul.f32 %v112, %v80
    %v118 = vmul.f32 %v115, %v81
    %v119 = vsel %vm87, %v117, 0.0
    %120 = vadd.xlane.f32.xlu0 %v119
    %v121 = vpop.xlane.xlu0 %120
    %v122 = vsel %vm87, %v118, 0.0
    %123 = vadd.xlane.f32.xlu0 %v122
    %v124 = vpop.xlane.xlu0 %123
    %v125 = vperm.slane %v82, 0
    %v126 = vmul.f32 %v121, %v125
    %v127 = vmul.f32 %v124, %v125
    %v128 = vadd.f32 %v126, 0.0
    %v129 = vadd.f32 %v127, 0.0
    %s130 = scalar_lea.vmem [#allocation6], 32
    %v131 = vld [vmem:[%s130] sm:$0xff]
    %v132 = vld [vmem:[%s130 + $0x8] sm:$0xff]
    %v133 = vld [vmem:[%s130 + $0x10] sm:$0xff]
    %v134 = vld [vmem:[%s130 + $0x18] sm:$0xff]
    %135 = vmatpush.msra.mxu0 0.0
    %136 = vmatpush.msra.mxu0 0.0
    %137 = vmatpush.msra.mxu0 0.0
    %138 = vmatpush.msra.mxu0 0.0
    %139 = vmatpush.msra.mxu0 0.0
    %140 = vmatpush.msra.mxu0 0.0
    %141 = vmatpush.msra.mxu0 0.0
    %142 = vmatpush.msra.mxu0 0.0
    %143 = vmatpush.msra.mxu0 0.0
    %144 = vmatpush.msra.mxu0 0.0
    %145 = vmatpush.msra.mxu0 0.0
    %146 = vmatpush.msra.mxu0 0.0
    %147 = vmatpush.msra.mxu0 %v134
    %148 = vmatpush.msra.mxu0 %v133
    %149 = vmatpush.msra.mxu0 %v132
    %150 = vmatpush.msra.mxu0 %v131
    %151 = vmatmul.f32.gmra.mxu0 %v89
    %v152 = vpop.f32.mrf.mxu0
    %v153 = vadd.f32 0.0, %v152
    %154 = vmatmul.f32.gmra.mxu0 %v92
    %v155 = vpop.f32.mrf.mxu0
    %v156 = vadd.f32 0.0, %v155
    %157 = vdwg.mxu0
    %v158 = vmul.f32 %v153, %v80
    %v159 = vmul.f32 %v156, %v81
    %v160 = vsel %vm87, %v158, 0.0
    %161 = vadd.xlane.f32.xlu0 %v160
    %v162 = vpop.xlane.xlu0 %161
    %v163 = vsel %vm87, %v159, 0.0
    %164 = vadd.xlane.f32.xlu0 %v163
    %v165 = vpop.xlane.xlu0 %164
    %v166 = vperm.slane %v82, 1
    %v167 = vmul.f32 %v162, %v166
    %v168 = vmul.f32 %v165, %v166
    %v169 = vadd.f32 %v128, %v167
    %v170 = vadd.f32 %v129, %v168
    %s171 = scalar_lea.vmem [#allocation6], 64
    %v172 = vld [vmem:[%s171] sm:$0xff]
    %v173 = vld [vmem:[%s171 + $0x8] sm:$0xff]
    %v174 = vld [vmem:[%s171 + $0x10] sm:$0xff]
    %v175 = vld [vmem:[%s171 + $0x18] sm:$0xff]
    %176 = vmatpush.msra.mxu0 0.0
    %177 = vmatpush.msra.mxu0 0.0
    %178 = vmatpush.msra.mxu0 0.0
    %179 = vmatpush.msra.mxu0 0.0
    %180 = vmatpush.msra.mxu0 0.0
    %181 = vmatpush.msra.mxu0 0.0
    %182 = vmatpush.msra.mxu0 0.0
    %183 = vmatpush.msra.mxu0 0.0
    %184 = vmatpush.msra.mxu0 0.0
    %185 = vmatpush.msra.mxu0 0.0
    %186 = vmatpush.msra.mxu0 0.0
    %187 = vmatpush.msra.mxu0 0.0
    %188 = vmatpush.msra.mxu0 %v175
    %189 = vmatpush.msra.mxu0 %v174
    %190 = vmatpush.msra.mxu0 %v173
    %191 = vmatpush.msra.mxu0 %v172
    %192 = vmatmul.f32.gmra.mxu0 %v89
    %v193 = vpop.f32.mrf.mxu0
    %v194 = vadd.f32 0.0, %v193
    %195 = vmatmul.f32.gmra.mxu0 %v92
    %v196 = vpop.f32.mrf.mxu0
    %v197 = vadd.f32 0.0, %v196
    %198 = vdwg.mxu0
    %v199 = vmul.f32 %v194, %v80
    %v200 = vmul.f32 %v197, %v81
    %v201 = vsel %vm87, %v199, 0.0
    %202 = vadd.xlane.f32.xlu0 %v201
    %v203 = vpop.xlane.xlu0 %202
    %v204 = vsel %vm87, %v200, 0.0
    %205 = vadd.xlane.f32.xlu0 %v204
    %v206 = vpop.xlane.xlu0 %205
    %v207 = vperm.slane %v82, 2
    %v208 = vmul.f32 %v203, %v207
    %v209 = vmul.f32 %v206, %v207
    %v210 = vadd.f32 %v169, %v208
    %v211 = vadd.f32 %v170, %v209
    %s212 = scalar_lea.vmem [#allocation6], 96
    %v213 = vld [vmem:[%s212] sm:$0xff]
    %v214 = vld [vmem:[%s212 + $0x8] sm:$0xff]
    %v215 = vld [vmem:[%s212 + $0x10] sm:$0xff]
    %v216 = vld [vmem:[%s212 + $0x18] sm:$0xff]
    %217 = vmatpush.msra.mxu0 0.0
    %218 = vmatpush.msra.mxu0 0.0
    %219 = vmatpush.msra.mxu0 0.0
    %220 = vmatpush.msra.mxu0 0.0
    %221 = vmatpush.msra.mxu0 0.0
    %222 = vmatpush.msra.mxu0 0.0
    %223 = vmatpush.msra.mxu0 0.0
    %224 = vmatpush.msra.mxu0 0.0
    %225 = vmatpush.msra.mxu0 0.0
    %226 = vmatpush.msra.mxu0 0.0
    %227 = vmatpush.msra.mxu0 0.0
    %228 = vmatpush.msra.mxu0 0.0
    %229 = vmatpush.msra.mxu0 %v216
    %230 = vmatpush.msra.mxu0 %v215
    %231 = vmatpush.msra.mxu0 %v214
    %232 = vmatpush.msra.mxu0 %v213
    %233 = vmatmul.f32.gmra.mxu0 %v89
    %v234 = vpop.f32.mrf.mxu0
    %v235 = vadd.f32 0.0, %v234
    %236 = vmatmul.f32.gmra.mxu0 %v92
    %v237 = vpop.f32.mrf.mxu0
    %v238 = vadd.f32 0.0, %v237
    %239 = vdwg.mxu0
    %v240 = vmul.f32 %v235, %v80
    %v241 = vmul.f32 %v238, %v81
    %v242 = vsel %vm87, %v240, 0.0
    %243 = vadd.xlane.f32.xlu0 %v242
    %v244 = vpop.xlane.xlu0 %243
    %v245 = vsel %vm87, %v241, 0.0
    %246 = vadd.xlane.f32.xlu0 %v245
    %v247 = vpop.xlane.xlu0 %246
    %v248 = vperm.slane %v82, 3
    %v249 = vmul.f32 %v244, %v248
    %v250 = vmul.f32 %v247, %v248
    %v251 = vadd.f32 %v210, %v249
    %v252 = vadd.f32 %v211, %v250
    %vm253 = vcmask 39936
    %254 = vst.msk [vmem:[%s4] sm:$0xff] %vm253, %v251
    %255 = vst.msk [vmem:[%s4 + $0x8] sm:$0xff] %vm253, %v252
    // Predicated region
    $region34: #{tpu_custom_call.1} parent=1 // pred_check
      _
    $region35: #{tpu_custom_call.1} parent=1 // pred_check_branch
      %257 = sbr.rel (0) target = $region37
    $region36: #{tpu_custom_call.1} parent=1 // pred_region
      _
    $region37: #{tpu_custom_call.1} parent=1 // pred_fallthru
      _
    // Predicated region
    $region38: #{tpu_custom_call.1} parent=1 // pred_check
      _
    $region39: #{tpu_custom_call.1} parent=1 // pred_check_branch
      %259 = sbr.rel (0) target = $region41
    $region40: #{tpu_custom_call.1} parent=1 // pred_region
      _
    $region41: #{tpu_custom_call.1} parent=1 // pred_fallthru
      _
    %260 = vsyncpa [#allocation3], 1
    %261 = vsyncpa [#allocation5], 1
    %262 = vsyncpa [#allocation8], 1

</llo_original>
